<compile_context>
chip_gen: v6e
topology: v6e:2x2x1
jax: 0.10.0
libtpu: 0.0.40
codegen_flags: <defaults>
</compile_context>

<pallas_src>
import jax
import jax.numpy as jnp
from jax.experimental import pallas as pl
from jax.experimental.pallas import tpu as pltpu


def _round_up(x: int, m: int) -> int:
    return ((x + m - 1) // m) * m


# ------------------------------ Pallas kernel ------------------------------ #
def _make_critic_kernel(n_inputs: int):
    """Builds the per-tile kernel; n_inputs = 1 (action) + len(state)."""

    def kernel(*refs):
        x_refs = refs[:n_inputs]
        w1_refs = refs[n_inputs:2 * n_inputs]
        b1_ref, w2_ref, b2_ref, wv_ref, bv_ref, o_ref = refs[2 * n_inputs:]

        # Layer 1: fused concat via split-W1 partial matmuls, f32 accumulation.
        acc = jnp.dot(x_refs[0][...], w1_refs[0][...],
                      preferred_element_type=jnp.float32)
        for x_ref, w_ref in zip(x_refs[1:], w1_refs[1:]):
            acc = acc + jnp.dot(x_ref[...], w_ref[...],
                                preferred_element_type=jnp.float32)
        h1 = jnp.maximum(acc + b1_ref[...], 0.0)

        # Layer 2.
        h2 = jnp.dot(h1.astype(w2_ref.dtype), w2_ref[...],
                     preferred_element_type=jnp.float32)
        h2 = jnp.maximum(h2 + b2_ref[...], 0.0)

        # Value head: VPU multiply + lane reduction (no N=1 MXU matmul).
        q = jnp.sum(h2 * wv_ref[...], axis=-1, keepdims=True) + bv_ref[...]
        o_ref[...] = q.astype(o_ref.dtype)

    return kernel


# -------------------------------- wrapper ----------------------------------- #
def critic_forward(action, state, params, *, block_b: int = 1024,
                   compute_dtype=jnp.bfloat16):
    """q = ValueHead(phi(action, *state)); phi = 2-layer fusion MLP."""
    if not isinstance(state, (tuple, list)):
        state = (state,)
    xs = (action,) + tuple(state)
    dims = [int(x.shape[-1]) for x in xs]
    in_dim = sum(dims)
    batch = int(action.shape[0])

    w1, b1, w2, b2, wv, bv = params
    hidden = int(w2.shape[0])

    # Split W1 row-wise to match the (action, *state) inputs (fused concat).
    w1_parts, off = [], 0
    for d in dims:
        w1_parts.append(w1[off:off + d, :])
        off += d

    # Batch tiling: multiple of 128, large enough to amortize per-step overhead.
    tb = max(128, min(_round_up(block_b, 128), _round_up(batch, 128)))
    b_pad = _round_up(batch, tb)
    grid = (b_pad // tb,)

    # dtype plan: bf16 matmul operands, f32 for everything after the MXU.
    xs_c = [x.astype(compute_dtype) for x in xs]
    if b_pad != batch:
        xs_c = [jnp.pad(x, ((0, b_pad - batch), (0, 0))) for x in xs_c]
    w1_c = [w.astype(compute_dtype) for w in w1_parts]
    w2_c = w2.astype(compute_dtype)
    b1_c = b1.reshape(1, hidden).astype(jnp.float32)
    b2_c = b2.reshape(1, hidden).astype(jnp.float32)
    wv_row = wv.reshape(1, hidden).astype(jnp.float32)
    bv_c = bv.reshape(1, 1).astype(jnp.float32)

    const_map = lambda i: (0, 0)
    x_specs = [pl.BlockSpec((tb, d), lambda i: (i, 0)) for d in dims]
    w1_specs = [pl.BlockSpec((d, hidden), const_map) for d in dims]
    p_specs = [pl.BlockSpec((1, hidden), const_map),       # b1
               pl.BlockSpec((hidden, hidden), const_map),  # w2
               pl.BlockSpec((1, hidden), const_map),       # b2
               pl.BlockSpec((1, hidden), const_map),       # wv (row layout)
               pl.BlockSpec((1, 1), const_map)]            # bv

    item = jnp.dtype(compute_dtype).itemsize
    cost = pl.CostEstimate(
        flops=2 * b_pad * (in_dim * hidden + hidden * hidden + hidden),
        transcendentals=0,
        bytes_accessed=(b_pad * in_dim * item
                        + (in_dim * hidden + hidden * hidden) * item
                        + (3 * hidden + 1) * 4
                        + b_pad * 4),
    )

    out = pl.pallas_call(
        _make_critic_kernel(len(xs)),
        out_shape=jax.ShapeDtypeStruct((b_pad, 1), jnp.float32),
        grid=grid,
        in_specs=x_specs + w1_specs + p_specs,
        out_specs=pl.BlockSpec((tb, 1), lambda i: (i, 0)),
        compiler_params=pltpu.CompilerParams(
            dimension_semantics=("parallel",)),
        cost_estimate=cost,
    )(*xs_c, *w1_c, b1_c, w2_c, b2_c, wv_row, bv_c)
    return out[:batch]


# ----------------------------- parameter init ------------------------------- #
def init_params(key, in_dim, hidden):
    def linear(key, fan_in, fan_out, bound=None):
        kw, kb = jax.random.split(key)
        if bound is None:
            bound = 1.0 / jnp.sqrt(fan_in)  # PyTorch default Linear init
        w = jax.random.uniform(kw, (fan_in, fan_out), jnp.float32, -bound, bound)
        b = jax.random.uniform(kb, (1, fan_out), jnp.float32, -bound, bound)
        return w, b

    k1, k2, k3 = jax.random.split(key, 3)
    w1, b1 = linear(k1, in_dim, hidden)
    w2, b2 = linear(k2, hidden, hidden)
    wv, bv = linear(k3, hidden, 1, bound=3e-3)  # ValueHead init, as in the repo
    return (w1, b1, w2, b2, wv, bv)


# ---------------------------- pure-JAX references ---------------------------- #
def critic_reference(action, state, params):
    x = jnp.concatenate((action,) + tuple(state), axis=-1)
    w1, b1, w2, b2, wv, bv = params
    h1 = jax.nn.relu(x @ w1 + b1)
    h2 = jax.nn.relu(h1 @ w2 + b2)
    return h2 @ wv + bv


def critic_reference_bf16(action, state, params):
    # Mirrors the kernel's dtype plan: bf16 matmul operands, f32 accumulation.
    x = jnp.concatenate((action,) + tuple(state), axis=-1).astype(jnp.bfloat16)
    w1, b1, w2, b2, wv, bv = params
    h1 = jax.nn.relu(jnp.dot(x, w1.astype(jnp.bfloat16),
                             preferred_element_type=jnp.float32) + b1)
    h2 = jax.nn.relu(jnp.dot(h1.astype(jnp.bfloat16), w2.astype(jnp.bfloat16),
                             preferred_element_type=jnp.float32) + b2)
    return jnp.sum(h2 * wv.reshape(1, -1), axis=-1, keepdims=True) + bv


if __name__ == "__main__":
    key = jax.random.PRNGKey(0)
    k_a, k_s1, k_s2, k_p = jax.random.split(key, 4)

    batch = 2
    action_dim = 2
    state_dims = (16, 6)   # state is a tuple of two feature tensors
    hidden = 32
    in_dim = action_dim + sum(state_dims)

    action = jax.random.normal(k_a, (batch, action_dim), jnp.float32)
    state = (
        jax.random.normal(k_s1, (batch, state_dims[0]), jnp.float32),
        jax.random.normal(k_s2, (batch, state_dims[1]), jnp.float32),
    )
    params = init_params(k_p, in_dim, hidden)

    fwd = jax.jit(critic_forward, static_argnames=("block_b", "compute_dtype"))

    q_ref = critic_reference(action, state, params)

    # f32 compute path: close to the full-precision reference.
    q32 = jax.block_until_ready(fwd(action, state, params,
                                    compute_dtype=jnp.float32))
    assert q32.shape == (batch, 1)
    assert jnp.allclose(q32, q_ref, atol=5e-4, rtol=5e-3), (q32, q_ref)

    # Default fast path (bf16 matmul operands, f32 accumulation): tight check
    # against a dtype-matched reference.
    q = jax.block_until_ready(fwd(action, state, params))
    q_ref_bf16 = critic_reference_bf16(action, state, params)
    assert q.shape == (batch, 1)
    assert jnp.allclose(q, q_ref_bf16, atol=1e-4, rtol=1e-3), (q, q_ref_bf16)

    print("KERNEL_OK")
</pallas_src>

<mosaic_0001>
module attributes {stable_mosaic.version = 11 : i64} {
  func.func @kernel(%arg0: i32, %arg1: memref<128x2xf32, #tpu.memory_space<vmem>>, %arg2: memref<128x16xf32, #tpu.memory_space<vmem>>, %arg3: memref<128x6xf32, #tpu.memory_space<vmem>>, %arg4: memref<2x32xf32, #tpu.memory_space<vmem>>, %arg5: memref<16x32xf32, #tpu.memory_space<vmem>>, %arg6: memref<6x32xf32, #tpu.memory_space<vmem>>, %arg7: memref<1x32xf32, #tpu.memory_space<vmem>>, %arg8: memref<32x32xf32, #tpu.memory_space<vmem>>, %arg9: memref<1x32xf32, #tpu.memory_space<vmem>>, %arg10: memref<1x32xf32, #tpu.memory_space<vmem>>, %arg11: memref<1x1xf32, #tpu.memory_space<vmem>>, %arg12: memref<128x1xf32, #tpu.memory_space<vmem>>) attributes {dimension_semantics = [#tpu.dimension_semantics<parallel>], iteration_bounds = array<i64: 1>, scalar_prefetch = 0 : i64, scratch_operands = 0 : i64, tpu.core_type = #tpu.core_type<tc>, window_params = [{transform_indices = @transform_0, window_bounds = array<i64: 128, 2>}, {transform_indices = @transform_1, window_bounds = array<i64: 128, 16>}, {transform_indices = @transform_2, window_bounds = array<i64: 128, 6>}, {pipeline_mode = #tpu.pipeline_mode<synchronous>, transform_indices = @transform_3, window_bounds = array<i64: 2, 32>}, {pipeline_mode = #tpu.pipeline_mode<synchronous>, transform_indices = @transform_4, window_bounds = array<i64: 16, 32>}, {pipeline_mode = #tpu.pipeline_mode<synchronous>, transform_indices = @transform_5, window_bounds = array<i64: 6, 32>}, {pipeline_mode = #tpu.pipeline_mode<synchronous>, transform_indices = @transform_6, window_bounds = array<i64: 1, 32>}, {pipeline_mode = #tpu.pipeline_mode<synchronous>, transform_indices = @transform_7, window_bounds = array<i64: 32, 32>}, {pipeline_mode = #tpu.pipeline_mode<synchronous>, transform_indices = @transform_8, window_bounds = array<i64: 1, 32>}, {pipeline_mode = #tpu.pipeline_mode<synchronous>, transform_indices = @transform_9, window_bounds = array<i64: 1, 32>}, {pipeline_mode = #tpu.pipeline_mode<synchronous>, transform_indices = @transform_10, window_bounds = array<i64: 1, 1>}, {transform_indices = @transform_11, window_bounds = array<i64: 128, 1>}]} {
    %c0 = arith.constant 0 : index
    %c0_0 = arith.constant 0 : index
    %0 = vector.load %arg1[%c0, %c0_0] : memref<128x2xf32, #tpu.memory_space<vmem>>, vector<128x2xf32>
    %c0_1 = arith.constant 0 : index
    %c0_2 = arith.constant 0 : index
    %1 = vector.load %arg4[%c0_1, %c0_2] : memref<2x32xf32, #tpu.memory_space<vmem>>, vector<2x32xf32>
    %cst = arith.constant dense<0.000000e+00> : vector<128x32xf32>
    %2 = tpu.matmul %0, %1, %cst {dimension_numbers = #tpu.dot_dimension_numbers<[1], [0], [0], [1], [0, 0, 1, 1], [], []>} : vector<128x2xf32>, vector<2x32xf32>, vector<128x32xf32> -> vector<128x32xf32>
    %c0_3 = arith.constant 0 : index
    %c0_4 = arith.constant 0 : index
    %3 = vector.load %arg2[%c0_3, %c0_4] : memref<128x16xf32, #tpu.memory_space<vmem>>, vector<128x16xf32>
    %c0_5 = arith.constant 0 : index
    %c0_6 = arith.constant 0 : index
    %4 = vector.load %arg5[%c0_5, %c0_6] : memref<16x32xf32, #tpu.memory_space<vmem>>, vector<16x32xf32>
    %cst_7 = arith.constant dense<0.000000e+00> : vector<128x32xf32>
    %5 = tpu.matmul %3, %4, %cst_7 {dimension_numbers = #tpu.dot_dimension_numbers<[1], [0], [0], [1], [0, 0, 1, 1], [], []>} : vector<128x16xf32>, vector<16x32xf32>, vector<128x32xf32> -> vector<128x32xf32>
    %6 = arith.addf %2, %5 : vector<128x32xf32>
    %c0_8 = arith.constant 0 : index
    %c0_9 = arith.constant 0 : index
    %7 = vector.load %arg3[%c0_8, %c0_9] : memref<128x6xf32, #tpu.memory_space<vmem>>, vector<128x6xf32>
    %c0_10 = arith.constant 0 : index
    %c0_11 = arith.constant 0 : index
    %8 = vector.load %arg6[%c0_10, %c0_11] : memref<6x32xf32, #tpu.memory_space<vmem>>, vector<6x32xf32>
    %cst_12 = arith.constant dense<0.000000e+00> : vector<128x32xf32>
    %9 = tpu.matmul %7, %8, %cst_12 {dimension_numbers = #tpu.dot_dimension_numbers<[1], [0], [0], [1], [0, 0, 1, 1], [], []>} : vector<128x6xf32>, vector<6x32xf32>, vector<128x32xf32> -> vector<128x32xf32>
    %10 = arith.addf %6, %9 : vector<128x32xf32>
    %c0_13 = arith.constant 0 : index
    %c0_14 = arith.constant 0 : index
    %11 = vector.load %arg7[%c0_13, %c0_14] : memref<1x32xf32, #tpu.memory_space<vmem>>, vector<1x32xf32>
    %12 = vector.broadcast %11 : vector<1x32xf32> to vector<128x32xf32>
    %13 = arith.addf %10, %12 : vector<128x32xf32>
    %cst_15 = arith.constant 0.000000e+00 : f32
    %14 = vector.broadcast %cst_15 : f32 to vector<128x32xf32>
    %15 = arith.maximumf %13, %14 : vector<128x32xf32>
    %c0_16 = arith.constant 0 : index
    %c0_17 = arith.constant 0 : index
    %16 = vector.load %arg8[%c0_16, %c0_17] : memref<32x32xf32, #tpu.memory_space<vmem>>, vector<32x32xf32>
    %cst_18 = arith.constant dense<0.000000e+00> : vector<128x32xf32>
    %17 = tpu.matmul %15, %16, %cst_18 {dimension_numbers = #tpu.dot_dimension_numbers<[1], [0], [0], [1], [0, 0, 1, 1], [], []>} : vector<128x32xf32>, vector<32x32xf32>, vector<128x32xf32> -> vector<128x32xf32>
    %c0_19 = arith.constant 0 : index
    %c0_20 = arith.constant 0 : index
    %18 = vector.load %arg9[%c0_19, %c0_20] : memref<1x32xf32, #tpu.memory_space<vmem>>, vector<1x32xf32>
    %19 = vector.broadcast %18 : vector<1x32xf32> to vector<128x32xf32>
    %20 = arith.addf %17, %19 : vector<128x32xf32>
    %cst_21 = arith.constant 0.000000e+00 : f32
    %21 = vector.broadcast %cst_21 : f32 to vector<128x32xf32>
    %22 = arith.maximumf %20, %21 : vector<128x32xf32>
    %c0_22 = arith.constant 0 : index
    %c0_23 = arith.constant 0 : index
    %23 = vector.load %arg10[%c0_22, %c0_23] : memref<1x32xf32, #tpu.memory_space<vmem>>, vector<1x32xf32>
    %24 = vector.broadcast %23 : vector<1x32xf32> to vector<128x32xf32>
    %25 = arith.mulf %22, %24 : vector<128x32xf32>
    %cst_24 = arith.constant dense<0.000000e+00> : vector<128xf32>
    %26 = vector.multi_reduction <add>, %25, %cst_24 [1] : vector<128x32xf32> to vector<128xf32>
    %27 = vector.shape_cast %26 : vector<128xf32> to vector<128x1xf32>
    %c0_25 = arith.constant 0 : index
    %c0_26 = arith.constant 0 : index
    %28 = vector.load %arg11[%c0_25, %c0_26] : memref<1x1xf32, #tpu.memory_space<vmem>>, vector<1x1xf32>
    %29 = vector.broadcast %28 : vector<1x1xf32> to vector<128x1xf32>
    %30 = arith.addf %27, %29 : vector<128x1xf32>
    %c0_27 = arith.constant 0 : index
    %c0_28 = arith.constant 0 : index
    %31 = vector.load %arg12[%c0_27, %c0_28] : memref<128x1xf32, #tpu.memory_space<vmem>>, vector<128x1xf32>
    tpu.vector_store %arg12[%c0_27, %c0_28], %30 {strides = array<i32>} : memref<128x1xf32, #tpu.memory_space<vmem>>, vector<128x1xf32>,
    return
  }
  func.func @transform_0(%arg0: i32) -> (i32, i32) {
    %c0_i32 = arith.constant 0 : i32
    %c0_i32_0 = arith.constant 0 : i32
    return %arg0, %c0_i32 : i32, i32
  }
  func.func @transform_1(%arg0: i32) -> (i32, i32) {
    %c0_i32 = arith.constant 0 : i32
    %c0_i32_0 = arith.constant 0 : i32
    return %arg0, %c0_i32 : i32, i32
  }
  func.func @transform_2(%arg0: i32) -> (i32, i32) {
    %c0_i32 = arith.constant 0 : i32
    %c0_i32_0 = arith.constant 0 : i32
    return %arg0, %c0_i32 : i32, i32
  }
  func.func @transform_3(%arg0: i32) -> (i32, i32) {
    %c0_i32 = arith.constant 0 : i32
    %c0_i32_0 = arith.constant 0 : i32
    %c0_i32_1 = arith.constant 0 : i32
    return %c0_i32, %c0_i32_0 : i32, i32
  }
  func.func @transform_4(%arg0: i32) -> (i32, i32) {
    %c0_i32 = arith.constant 0 : i32
    %c0_i32_0 = arith.constant 0 : i32
    %c0_i32_1 = arith.constant 0 : i32
    return %c0_i32, %c0_i32_0 : i32, i32
  }
  func.func @transform_5(%arg0: i32) -> (i32, i32) {
    %c0_i32 = arith.constant 0 : i32
    %c0_i32_0 = arith.constant 0 : i32
    %c0_i32_1 = arith.constant 0 : i32
    return %c0_i32, %c0_i32_0 : i32, i32
  }
  func.func @transform_6(%arg0: i32) -> (i32, i32) {
    %c0_i32 = arith.constant 0 : i32
    %c0_i32_0 = arith.constant 0 : i32
    %c0_i32_1 = arith.constant 0 : i32
    return %c0_i32, %c0_i32_0 : i32, i32
  }
  func.func @transform_7(%arg0: i32) -> (i32, i32) {
    %c0_i32 = arith.constant 0 : i32
    %c0_i32_0 = arith.constant 0 : i32
    %c0_i32_1 = arith.constant 0 : i32
    return %c0_i32, %c0_i32_0 : i32, i32
  }
  func.func @transform_8(%arg0: i32) -> (i32, i32) {
    %c0_i32 = arith.constant 0 : i32
    %c0_i32_0 = arith.constant 0 : i32
    %c0_i32_1 = arith.constant 0 : i32
    return %c0_i32, %c0_i32_0 : i32, i32
  }
  func.func @transform_9(%arg0: i32) -> (i32, i32) {
    %c0_i32 = arith.constant 0 : i32
    %c0_i32_0 = arith.constant 0 : i32
    %c0_i32_1 = arith.constant 0 : i32
    return %c0_i32, %c0_i32_0 : i32, i32
  }
  func.func @transform_10(%arg0: i32) -> (i32, i32) {
    %c0_i32 = arith.constant 0 : i32
    %c0_i32_0 = arith.constant 0 : i32
    %c0_i32_1 = arith.constant 0 : i32
    return %c0_i32, %c0_i32_0 : i32, i32
  }
  func.func @transform_11(%arg0: i32) -> (i32, i32) {
    %c0_i32 = arith.constant 0 : i32
    %c0_i32_0 = arith.constant 0 : i32
    return %arg0, %c0_i32 : i32, i32
  }
}

</mosaic_0001>

<llo_original>
// kernel: critic_forward.1
$region0: #{critic_forward.1}
  #allocation0 [shape = 'u32[]', space=smem, size = 0x4, offset = 0x4, fixed_abs, tag = 'smem constant byte address 0x4 - core index']
  #allocation1 [shape = 'u32[144,128]{1,0:T(1,128)}', space=vmem, size = 0x12000, scoped, tag = 'internal scratch']
  #allocation2 [shape = 'f32[1,1]{1,0:T(1,128)S(1)}', space=vmem, size = 0x200, scoped, tag = 'scoped memory for critic_forward.1']
  %s0 = inlined_call_operand.vmem [shape: f32[128,2], index: 0, kind: input, shape index: {}]
  %s1 = inlined_call_operand.vmem [shape: f32[128,16], index: 1, kind: input, shape index: {}]
  %s2 = inlined_call_operand.vmem [shape: f32[128,6], index: 2, kind: input, shape index: {}]
  %s3 = inlined_call_operand.vmem [shape: f32[2,32], index: 3, kind: input, shape index: {}]
  %s4 = inlined_call_operand.vmem [shape: f32[16,32], index: 4, kind: input, shape index: {}]
  %s5 = inlined_call_operand.vmem [shape: f32[6,32], index: 5, kind: input, shape index: {}]
  %s6 = inlined_call_operand.vmem [shape: f32[1,32], index: 6, kind: input, shape index: {}]
  %s7 = inlined_call_operand.vmem [shape: f32[32,32], index: 7, kind: input, shape index: {}]
  %s8 = inlined_call_operand.vmem [shape: f32[1,32], index: 8, kind: input, shape index: {}]
  %s9 = inlined_call_operand.vmem [shape: f32[1,32], index: 9, kind: input, shape index: {}]
  %s10 = inlined_call_operand.<no memory space> [shape: f32[1,1], index: 10, kind: input, shape index: {}]
  %s11 = inlined_call_operand.vmem [shape: f32[128,1], index: 11, kind: output, shape index: {}]
  %s12 = sld [smem:[#allocation0]]
  $region54: #{critic_forward.1} parent=0
    _
  %s14 = ssub.s32 1, %s12
  %s15 = scalar_select 0, %s14, %s12
  %v16 = vstv %s10
  %17 = vst [vmem:[#allocation2] sm:$0x1] %v16
  // Predicated region
  $region2: #{critic_forward.1} parent=0 // pred_check
    _
  $region3: #{critic_forward.1} parent=0 // pred_check_branch
    %19 = sbr.rel (0) target = $region5
  $region4: #{critic_forward.1} parent=0 // pred_region
    _
  $region5: #{critic_forward.1} parent=0 // pred_fallthru
    _
  // Predicated region
  $region6: #{critic_forward.1} parent=0 // pred_check
    _
  $region7: #{critic_forward.1} parent=0 // pred_check_branch
    %21 = sbr.rel (0) target = $region9
  $region8: #{critic_forward.1} parent=0 // pred_region
    _
  $region9: #{critic_forward.1} parent=0 // pred_fallthru
    _
  // Predicated region
  $region10: #{critic_forward.1} parent=0 // pred_check
    _
  $region11: #{critic_forward.1} parent=0 // pred_check_branch
    %23 = sbr.rel (0) target = $region13
  $region12: #{critic_forward.1} parent=0 // pred_region
    _
  $region13: #{critic_forward.1} parent=0 // pred_fallthru
    _
  // Predicated region
  $region14: #{critic_forward.1} parent=0 // pred_check
    _
  $region15: #{critic_forward.1} parent=0 // pred_check_branch
    %25 = sbr.rel (0) target = $region17
  $region16: #{critic_forward.1} parent=0 // pred_region
    _
  $region17: #{critic_forward.1} parent=0 // pred_fallthru
    _
  // Predicated region
  $region18: #{critic_forward.1} parent=0 // pred_check
    _
  $region19: #{critic_forward.1} parent=0 // pred_check_branch
    %27 = sbr.rel (0) target = $region21
  $region20: #{critic_forward.1} parent=0 // pred_region
    _
  $region21: #{critic_forward.1} parent=0 // pred_fallthru
    _
  // Predicated region
  $region22: #{critic_forward.1} parent=0 // pred_check
    _
  $region23: #{critic_forward.1} parent=0 // pred_check_branch
    %29 = sbr.rel (0) target = $region25
  $region24: #{critic_forward.1} parent=0 // pred_region
    _
  $region25: #{critic_forward.1} parent=0 // pred_fallthru
    _
  // Predicated region
  $region26: #{critic_forward.1} parent=0 // pred_check
    _
  $region27: #{critic_forward.1} parent=0 // pred_check_branch
    %31 = sbr.rel (0) target = $region29
  $region28: #{critic_forward.1} parent=0 // pred_region
    _
  $region29: #{critic_forward.1} parent=0 // pred_fallthru
    _
  // Predicated region
  $region30: #{critic_forward.1} parent=0 // pred_check
    _
  $region31: #{critic_forward.1} parent=0 // pred_check_branch
    %33 = sbr.rel (0) target = $region33
  $region32: #{critic_forward.1} parent=0 // pred_region
    _
  $region33: #{critic_forward.1} parent=0 // pred_fallthru
    _
  // Predicated region
  $region34: #{critic_forward.1} parent=0 // pred_check
    _
  $region35: #{critic_forward.1} parent=0 // pred_check_branch
    %35 = sbr.rel (0) target = $region37
  $region36: #{critic_forward.1} parent=0 // pred_region
    _
  $region37: #{critic_forward.1} parent=0 // pred_fallthru
    _
  // Predicated region
  $region38: #{critic_forward.1} parent=0 // pred_check
    _
  $region39: #{critic_forward.1} parent=0 // pred_check_branch
    %37 = sbr.rel (0) target = $region41
  $region40: #{critic_forward.1} parent=0 // pred_region
    _
  $region41: #{critic_forward.1} parent=0 // pred_fallthru
    _
  // Predicated region
  $region42: #{critic_forward.1} parent=0 // pred_check
    _
  $region43: #{critic_forward.1} parent=0 // pred_check_branch
    %39 = sbr.rel (0) target = $region45
  $region44: #{critic_forward.1} parent=0 // pred_region
    _
  $region45: #{critic_forward.1} parent=0 // pred_fallthru
    _
  %v40 = vld [vmem:[%s0] sm:$0xff]
  %v41 = vld [vmem:[%s0 + $0x8] sm:$0xff]
  %v42 = vld [vmem:[%s0 + $0x10] sm:$0xff]
  %v43 = vld [vmem:[%s0 + $0x18] sm:$0xff]
  %v44 = vld [vmem:[%s0 + $0x20] sm:$0xff]
  %v45 = vld [vmem:[%s0 + $0x28] sm:$0xff]
  %v46 = vld [vmem:[%s0 + $0x30] sm:$0xff]
  %v47 = vld [vmem:[%s0 + $0x38] sm:$0xff]
  %v48 = vld [vmem:[%s0 + $0x40] sm:$0xff]
  %v49 = vld [vmem:[%s0 + $0x48] sm:$0xff]
  %v50 = vld [vmem:[%s0 + $0x50] sm:$0xff]
  %v51 = vld [vmem:[%s0 + $0x58] sm:$0xff]
  %v52 = vld [vmem:[%s0 + $0x60] sm:$0xff]
  %v53 = vld [vmem:[%s0 + $0x68] sm:$0xff]
  %v54 = vld [vmem:[%s0 + $0x70] sm:$0xff]
  %v55 = vld [vmem:[%s0 + $0x78] sm:$0xff]
  %v56 = vld [vmem:[%s3] sm:$0x3]
  %v57 = vld [vmem:[%s1] sm:$0xff]
  %v58 = vld [vmem:[%s1 + $0x8] sm:$0xff]
  %v59 = vld [vmem:[%s1 + $0x10] sm:$0xff]
  %v60 = vld [vmem:[%s1 + $0x18] sm:$0xff]
  %v61 = vld [vmem:[%s1 + $0x20] sm:$0xff]
  %v62 = vld [vmem:[%s1 + $0x28] sm:$0xff]
  %v63 = vld [vmem:[%s1 + $0x30] sm:$0xff]
  %v64 = vld [vmem:[%s1 + $0x38] sm:$0xff]
  %v65 = vld [vmem:[%s1 + $0x40] sm:$0xff]
  %v66 = vld [vmem:[%s1 + $0x48] sm:$0xff]
  %v67 = vld [vmem:[%s1 + $0x50] sm:$0xff]
  %v68 = vld [vmem:[%s1 + $0x58] sm:$0xff]
  %v69 = vld [vmem:[%s1 + $0x60] sm:$0xff]
  %v70 = vld [vmem:[%s1 + $0x68] sm:$0xff]
  %v71 = vld [vmem:[%s1 + $0x70] sm:$0xff]
  %v72 = vld [vmem:[%s1 + $0x78] sm:$0xff]
  %v73 = vld [vmem:[%s4] sm:$0xff]
  %v74 = vld [vmem:[%s4 + $0x8] sm:$0xff]
  %vm75 = vcmask 130048
  %v77 = vsel %vm75, %v57, 0
  %v80 = vsel %vm75, %v58, 0
  %v83 = vsel %vm75, %v59, 0
  %v86 = vsel %vm75, %v60, 0
  %v89 = vsel %vm75, %v61, 0
  %v92 = vsel %vm75, %v62, 0
  %v95 = vsel %vm75, %v63, 0
  %v98 = vsel %vm75, %v64, 0
  %v101 = vsel %vm75, %v65, 0
  %v104 = vsel %vm75, %v66, 0
  %v107 = vsel %vm75, %v67, 0
  %v110 = vsel %vm75, %v68, 0
  %v113 = vsel %vm75, %v69, 0
  %v116 = vsel %vm75, %v70, 0
  %v119 = vsel %vm75, %v71, 0
  %v122 = vsel %vm75, %v72, 0
  %124 = vmatprep.subr.mxu0 0.0
  %125 = vmatpush1.msra.mxu0 0.0
  %126 = vmatprep.subr.mxu0 0.0
  %127 = vmatpush1.msra.mxu0 0.0
  %128 = vmatprep.subr.mxu0 0.0
  %129 = vmatpush1.msra.mxu0 0.0
  %130 = vmatprep.subr.mxu0 0.0
  %131 = vmatpush1.msra.mxu0 0.0
  %132 = vmatprep.subr.mxu0 0.0
  %133 = vmatpush1.msra.mxu0 0.0
  %134 = vmatprep.subr.mxu0 0.0
  %135 = vmatpush1.msra.mxu0 0.0
  %136 = vmatprep.subr.mxu0 0.0
  %137 = vmatpush1.msra.mxu0 0.0
  %138 = vmatprep.subr.mxu0 0.0
  %139 = vmatpush1.msra.mxu0 0.0
  %140 = vmatprep.subr.mxu0 0.0
  %141 = vmatpush1.msra.mxu0 0.0
  %142 = vmatprep.subr.mxu0 0.0
  %143 = vmatpush1.msra.mxu0 0.0
  %144 = vmatprep.subr.mxu0 0.0
  %145 = vmatpush1.msra.mxu0 0.0
  %146 = vmatprep.subr.mxu0 0.0
  %147 = vmatpush1.msra.mxu0 0.0
  %148 = vmatprep.subr.mxu0 0.0
  %149 = vmatpush1.msra.mxu0 0.0
  %150 = vmatprep.subr.mxu0 0.0
  %151 = vmatpush1.msra.mxu0 0.0
  %152 = vmatprep.subr.mxu0 0.0
  %153 = vmatpush1.msra.mxu0 %v74
  %154 = vmatprep.subr.mxu0 0.0
  %155 = vmatpush1.msra.mxu0 %v73
  %156 = vmatprep.subr.mxu0 0.0
  %157 = vmatpush2.msra.mxu0 0.0
  %158 = vmatprep.subr.mxu0 0.0
  %159 = vmatpush2.msra.mxu0 0.0
  %160 = vmatprep.subr.mxu0 0.0
  %161 = vmatpush2.msra.mxu0 0.0
  %162 = vmatprep.subr.mxu0 0.0
  %163 = vmatpush2.msra.mxu0 0.0
  %164 = vmatprep.subr.mxu0 0.0
  %165 = vmatpush2.msra.mxu0 0.0
  %166 = vmatprep.subr.mxu0 0.0
  %167 = vmatpush2.msra.mxu0 0.0
  %168 = vmatprep.subr.mxu0 0.0
  %169 = vmatpush2.msra.mxu0 0.0
  %170 = vmatprep.subr.mxu0 0.0
  %171 = vmatpush2.msra.mxu0 0.0
  %172 = vmatprep.subr.mxu0 0.0
  %173 = vmatpush2.msra.mxu0 0.0
  %174 = vmatprep.subr.mxu0 0.0
  %175 = vmatpush2.msra.mxu0 0.0
  %176 = vmatprep.subr.mxu0 0.0
  %177 = vmatpush2.msra.mxu0 0.0
  %178 = vmatprep.subr.mxu0 0.0
  %179 = vmatpush2.msra.mxu0 0.0
  %180 = vmatprep.subr.mxu0 0.0
  %181 = vmatpush2.msra.mxu0 0.0
  %182 = vmatprep.subr.mxu0 0.0
  %183 = vmatpush2.msra.mxu0 0.0
  %184 = vmatprep.subr.mxu0 0.0
  %185 = vmatpush2.msra.mxu0 0.0
  %186 = vmatprep.subr.mxu0 0.0
  %187 = vmatpush2.msra.mxu0 0.0
  %188 = vmatprep.mubr.f32.mxu0 0.0
  %189 = vmatmul.mubr.f32.gmra.mxu0 %v77
  %v190 = vpop.f32.mrf.mxu0
  %v191 = vadd.f32 0.0, %v190
  %v192 = vpop.f32.mrf.mxu0
  %193 = vmatprep.mubr.f32.mxu0 0.0
  %194 = vmatmul.mubr.f32.gmra.mxu0 %v80
  %v195 = vpop.f32.mrf.mxu0
  %v196 = vadd.f32 0.0, %v195
  %v197 = vpop.f32.mrf.mxu0
  %198 = vmatprep.mubr.f32.mxu0 0.0
  %199 = vmatmul.mubr.f32.gmra.mxu0 %v83
  %v200 = vpop.f32.mrf.mxu0
  %v201 = vadd.f32 0.0, %v200
  %v202 = vpop.f32.mrf.mxu0
  %203 = vmatprep.mubr.f32.mxu0 0.0
  %204 = vmatmul.mubr.f32.gmra.mxu0 %v86
  %v205 = vpop.f32.mrf.mxu0
  %v206 = vadd.f32 0.0, %v205
  %v207 = vpop.f32.mrf.mxu0
  %208 = vmatprep.mubr.f32.mxu0 0.0
  %209 = vmatmul.mubr.f32.gmra.mxu0 %v89
  %v210 = vpop.f32.mrf.mxu0
  %v211 = vadd.f32 0.0, %v210
  %v212 = vpop.f32.mrf.mxu0
  %213 = vmatprep.mubr.f32.mxu0 0.0
  %214 = vmatmul.mubr.f32.gmra.mxu0 %v92
  %v215 = vpop.f32.mrf.mxu0
  %v216 = vadd.f32 0.0, %v215
  %v217 = vpop.f32.mrf.mxu0
  %218 = vmatprep.mubr.f32.mxu0 0.0
  %219 = vmatmul.mubr.f32.gmra.mxu0 %v95
  %v220 = vpop.f32.mrf.mxu0
  %v221 = vadd.f32 0.0, %v220
  %v222 = vpop.f32.mrf.mxu0
  %223 = vmatprep.mubr.f32.mxu0 0.0
  %224 = vmatmul.mubr.f32.gmra.mxu0 %v98
  %v225 = vpop.f32.mrf.mxu0
  %v226 = vadd.f32 0.0, %v225
  %v227 = vpop.f32.mrf.mxu0
  %228 = vmatprep.mubr.f32.mxu0 0.0
  %229 = vmatmul.mubr.f32.gmra.mxu0 %v101
  %v230 = vpop.f32.mrf.mxu0
  %v231 = vadd.f32 0.0, %v230
  %v232 = vpop.f32.mrf.mxu0
  %233 = vmatprep.mubr.f32.mxu0 0.0
  %234 = vmatmul.mubr.f32.gmra.mxu0 %v104
  %v235 = vpop.f32.mrf.mxu0
  %v236 = vadd.f32 0.0, %v235
  %v237 = vpop.f32.mrf.mxu0
  %238 = vmatprep.mubr.f32.mxu0 0.0
  %239 = vmatmul.mubr.f32.gmra.mxu0 %v107
  %v240 = vpop.f32.mrf.mxu0
  %v241 = vadd.f32 0.0, %v240
  %v242 = vpop.f32.mrf.mxu0
  %243 = vmatprep.mubr.f32.mxu0 0.0
  %244 = vmatmul.mubr.f32.gmra.mxu0 %v110
  %v245 = vpop.f32.mrf.mxu0
  %v246 = vadd.f32 0.0, %v245
  %v247 = vpop.f32.mrf.mxu0
  %248 = vmatprep.mubr.f32.mxu0 0.0
  %249 = vmatmul.mubr.f32.gmra.mxu0 %v113
  %v250 = vpop.f32.mrf.mxu0
  %v251 = vadd.f32 0.0, %v250
  %v252 = vpop.f32.mrf.mxu0
  %253 = vmatprep.mubr.f32.mxu0 0.0
  %254 = vmatmul.mubr.f32.gmra.mxu0 %v116
  %v255 = vpop.f32.mrf.mxu0
  %v256 = vadd.f32 0.0, %v255
  %v257 = vpop.f32.mrf.mxu0
  %258 = vmatprep.mubr.f32.mxu0 0.0
  %259 = vmatmul.mubr.f32.gmra.mxu0 %v119
  %v260 = vpop.f32.mrf.mxu0
  %v261 = vadd.f32 0.0, %v260
  %v262 = vpop.f32.mrf.mxu0
  %263 = vmatprep.mubr.f32.mxu0 0.0
  %264 = vmatmul.mubr.f32.gmra.mxu0 %v122
  %v265 = vpop.f32.mrf.mxu0
  %v266 = vadd.f32 0.0, %v265
  %v267 = vpop.f32.mrf.mxu0
  %268 = vdwg.mxu0
  %vm269 = vcmask 15360
  %v271 = vsel %vm269, %v40, 0
  %v274 = vsel %vm269, %v41, 0
  %v277 = vsel %vm269, %v42, 0
  %v280 = vsel %vm269, %v43, 0
  %v283 = vsel %vm269, %v44, 0
  %v286 = vsel %vm269, %v45, 0
  %v289 = vsel %vm269, %v46, 0
  %v292 = vsel %vm269, %v47, 0
  %v295 = vsel %vm269, %v48, 0
  %v298 = vsel %vm269, %v49, 0
  %v301 = vsel %vm269, %v50, 0
  %v304 = vsel %vm269, %v51, 0
  %v307 = vsel %vm269, %v52, 0
  %v310 = vsel %vm269, %v53, 0
  %v313 = vsel %vm269, %v54, 0
  %v316 = vsel %vm269, %v55, 0
  %vm318 = vcmask 1041408
  %v320 = vsel %vm318, %v56, 0
  %322 = vmatprep.subr.mxu0 0.0
  %323 = vmatpush1.msra.mxu0 0.0
  %324 = vmatprep.subr.mxu0 0.0
  %325 = vmatpush1.msra.mxu0 0.0
  %326 = vmatprep.subr.mxu0 0.0
  %327 = vmatpush1.msra.mxu0 0.0
  %328 = vmatprep.subr.mxu0 0.0
  %329 = vmatpush1.msra.mxu0 0.0
  %330 = vmatprep.subr.mxu0 0.0
  %331 = vmatpush1.msra.mxu0 0.0
  %332 = vmatprep.subr.mxu0 0.0
  %333 = vmatpush1.msra.mxu0 0.0
  %334 = vmatprep.subr.mxu0 0.0
  %335 = vmatpush1.msra.mxu0 0.0
  %336 = vmatprep.subr.mxu0 0.0
  %337 = vmatpush1.msra.mxu0 0.0
  %338 = vmatprep.subr.mxu0 0.0
  %339 = vmatpush1.msra.mxu0 0.0
  %340 = vmatprep.subr.mxu0 0.0
  %341 = vmatpush1.msra.mxu0 0.0
  %342 = vmatprep.subr.mxu0 0.0
  %343 = vmatpush1.msra.mxu0 0.0
  %344 = vmatprep.subr.mxu0 0.0
  %345 = vmatpush1.msra.mxu0 0.0
  %346 = vmatprep.subr.mxu0 0.0
  %347 = vmatpush1.msra.mxu0 0.0
  %348 = vmatprep.subr.mxu0 0.0
  %349 = vmatpush1.msra.mxu0 0.0
  %350 = vmatprep.subr.mxu0 0.0
  %351 = vmatpush1.msra.mxu0 0.0
  %352 = vmatprep.subr.mxu0 0.0
  %353 = vmatpush1.msra.mxu0 %v320
  %354 = vmatprep.subr.mxu0 0.0
  %355 = vmatpush2.msra.mxu0 0.0
  %356 = vmatprep.subr.mxu0 0.0
  %357 = vmatpush2.msra.mxu0 0.0
  %358 = vmatprep.subr.mxu0 0.0
  %359 = vmatpush2.msra.mxu0 0.0
  %360 = vmatprep.subr.mxu0 0.0
  %361 = vmatpush2.msra.mxu0 0.0
  %362 = vmatprep.subr.mxu0 0.0
  %363 = vmatpush2.msra.mxu0 0.0
  %364 = vmatprep.subr.mxu0 0.0
  %365 = vmatpush2.msra.mxu0 0.0
  %366 = vmatprep.subr.mxu0 0.0
  %367 = vmatpush2.msra.mxu0 0.0
  %368 = vmatprep.subr.mxu0 0.0
  %369 = vmatpush2.msra.mxu0 0.0
  %370 = vmatprep.subr.mxu0 0.0
  %371 = vmatpush2.msra.mxu0 0.0
  %372 = vmatprep.subr.mxu0 0.0
  %373 = vmatpush2.msra.mxu0 0.0
  %374 = vmatprep.subr.mxu0 0.0
  %375 = vmatpush2.msra.mxu0 0.0
  %376 = vmatprep.subr.mxu0 0.0
  %377 = vmatpush2.msra.mxu0 0.0
  %378 = vmatprep.subr.mxu0 0.0
  %379 = vmatpush2.msra.mxu0 0.0
  %380 = vmatprep.subr.mxu0 0.0
  %381 = vmatpush2.msra.mxu0 0.0
  %382 = vmatprep.subr.mxu0 0.0
  %383 = vmatpush2.msra.mxu0 0.0
  %384 = vmatprep.subr.mxu0 0.0
  %385 = vmatpush2.msra.mxu0 0.0
  %386 = vmatprep.mubr.f32.mxu0 0.0
  %387 = vmatmul.mubr.f32.gmra.mxu0 %v271
  %v388 = vpop.f32.mrf.mxu0
  %v389 = vadd.f32 %v191, %v388
  %v390 = vpop.f32.mrf.mxu0
  %391 = vmatprep.mubr.f32.mxu0 0.0
  %392 = vmatmul.mubr.f32.gmra.mxu0 %v274
  %v393 = vpop.f32.mrf.mxu0
  %v394 = vadd.f32 %v196, %v393
  %v395 = vpop.f32.mrf.mxu0
  %396 = vmatprep.mubr.f32.mxu0 0.0
  %397 = vmatmul.mubr.f32.gmra.mxu0 %v277
  %v398 = vpop.f32.mrf.mxu0
  %v399 = vadd.f32 %v201, %v398
  %v400 = vpop.f32.mrf.mxu0
  %401 = vmatprep.mubr.f32.mxu0 0.0
  %402 = vmatmul.mubr.f32.gmra.mxu0 %v280
  %v403 = vpop.f32.mrf.mxu0
  %v404 = vadd.f32 %v206, %v403
  %v405 = vpop.f32.mrf.mxu0
  %406 = vmatprep.mubr.f32.mxu0 0.0
  %407 = vmatmul.mubr.f32.gmra.mxu0 %v283
  %v408 = vpop.f32.mrf.mxu0
  %v409 = vadd.f32 %v211, %v408
  %v410 = vpop.f32.mrf.mxu0
  %411 = vmatprep.mubr.f32.mxu0 0.0
  %412 = vmatmul.mubr.f32.gmra.mxu0 %v286
  %v413 = vpop.f32.mrf.mxu0
  %v414 = vadd.f32 %v216, %v413
  %v415 = vpop.f32.mrf.mxu0
  %416 = vmatprep.mubr.f32.mxu0 0.0
  %417 = vmatmul.mubr.f32.gmra.mxu0 %v289
  %v418 = vpop.f32.mrf.mxu0
  %v419 = vadd.f32 %v221, %v418
  %v420 = vpop.f32.mrf.mxu0
  %421 = vmatprep.mubr.f32.mxu0 0.0
  %422 = vmatmul.mubr.f32.gmra.mxu0 %v292
  %v423 = vpop.f32.mrf.mxu0
  %v424 = vadd.f32 %v226, %v423
  %v425 = vpop.f32.mrf.mxu0
  %426 = vmatprep.mubr.f32.mxu0 0.0
  %427 = vmatmul.mubr.f32.gmra.mxu0 %v295
  %v428 = vpop.f32.mrf.mxu0
  %v429 = vadd.f32 %v231, %v428
  %v430 = vpop.f32.mrf.mxu0
  %431 = vmatprep.mubr.f32.mxu0 0.0
  %432 = vmatmul.mubr.f32.gmra.mxu0 %v298
  %v433 = vpop.f32.mrf.mxu0
  %v434 = vadd.f32 %v236, %v433
  %v435 = vpop.f32.mrf.mxu0
  %436 = vmatprep.mubr.f32.mxu0 0.0
  %437 = vmatmul.mubr.f32.gmra.mxu0 %v301
  %v438 = vpop.f32.mrf.mxu0
  %v439 = vadd.f32 %v241, %v438
  %v440 = vpop.f32.mrf.mxu0
  %441 = vmatprep.mubr.f32.mxu0 0.0
  %442 = vmatmul.mubr.f32.gmra.mxu0 %v304
  %v443 = vpop.f32.mrf.mxu0
  %v444 = vadd.f32 %v246, %v443
  %v445 = vpop.f32.mrf.mxu0
  %446 = vmatprep.mubr.f32.mxu0 0.0
  %447 = vmatmul.mubr.f32.gmra.mxu0 %v307
  %v448 = vpop.f32.mrf.mxu0
  %v449 = vadd.f32 %v251, %v448
  %v450 = vpop.f32.mrf.mxu0
  %451 = vmatprep.mubr.f32.mxu0 0.0
  %452 = vmatmul.mubr.f32.gmra.mxu0 %v310
  %v453 = vpop.f32.mrf.mxu0
  %v454 = vadd.f32 %v256, %v453
  %v455 = vpop.f32.mrf.mxu0
  %456 = vmatprep.mubr.f32.mxu0 0.0
  %457 = vmatmul.mubr.f32.gmra.mxu0 %v313
  %v458 = vpop.f32.mrf.mxu0
  %v459 = vadd.f32 %v261, %v458
  %v460 = vpop.f32.mrf.mxu0
  %461 = vmatprep.mubr.f32.mxu0 0.0
  %462 = vmatmul.mubr.f32.gmra.mxu0 %v316
  %v463 = vpop.f32.mrf.mxu0
  %v464 = vadd.f32 %v266, %v463
  %v465 = vpop.f32.mrf.mxu0
  %466 = vdwg.mxu0
  %v467 = vld [vmem:[%s2] sm:$0xff]
  %v468 = vld [vmem:[%s2 + $0x8] sm:$0xff]
  %v469 = vld [vmem:[%s2 + $0x10] sm:$0xff]
  %v470 = vld [vmem:[%s2 + $0x18] sm:$0xff]
  %v471 = vld [vmem:[%s2 + $0x20] sm:$0xff]
  %v472 = vld [vmem:[%s2 + $0x28] sm:$0xff]
  %v473 = vld [vmem:[%s2 + $0x30] sm:$0xff]
  %v474 = vld [vmem:[%s2 + $0x38] sm:$0xff]
  %v475 = vld [vmem:[%s2 + $0x40] sm:$0xff]
  %v476 = vld [vmem:[%s2 + $0x48] sm:$0xff]
  %v477 = vld [vmem:[%s2 + $0x50] sm:$0xff]
  %v478 = vld [vmem:[%s2 + $0x58] sm:$0xff]
  %v479 = vld [vmem:[%s2 + $0x60] sm:$0xff]
  %v480 = vld [vmem:[%s2 + $0x68] sm:$0xff]
  %v481 = vld [vmem:[%s2 + $0x70] sm:$0xff]
  %v482 = vld [vmem:[%s2 + $0x78] sm:$0xff]
  %v483 = vld [vmem:[%s5] sm:$0x3f]
  %vm484 = vcmask 48128
  %v486 = vsel %vm484, %v467, 0
  %v489 = vsel %vm484, %v468, 0
  %v492 = vsel %vm484, %v469, 0
  %v495 = vsel %vm484, %v470, 0
  %v498 = vsel %vm484, %v471, 0
  %v501 = vsel %vm484, %v472, 0
  %v504 = vsel %vm484, %v473, 0
  %v507 = vsel %vm484, %v474, 0
  %v510 = vsel %vm484, %v475, 0
  %v513 = vsel %vm484, %v476, 0
  %v516 = vsel %vm484, %v477, 0
  %v519 = vsel %vm484, %v478, 0
  %v522 = vsel %vm484, %v479, 0
  %v525 = vsel %vm484, %v480, 0
  %v528 = vsel %vm484, %v481, 0
  %v531 = vsel %vm484, %v482, 0
  %vm533 = vcmask 1045504
  %v535 = vsel %vm533, %v483, 0
  %537 = vmatprep.subr.mxu0 0.0
  %538 = vmatpush1.msra.mxu0 0.0
  %539 = vmatprep.subr.mxu0 0.0
  %540 = vmatpush1.msra.mxu0 0.0
  %541 = vmatprep.subr.mxu0 0.0
  %542 = vmatpush1.msra.mxu0 0.0
  %543 = vmatprep.subr.mxu0 0.0
  %544 = vmatpush1.msra.mxu0 0.0
  %545 = vmatprep.subr.mxu0 0.0
  %546 = vmatpush1.msra.mxu0 0.0
  %547 = vmatprep.subr.mxu0 0.0
  %548 = vmatpush1.msra.mxu0 0.0
  %549 = vmatprep.subr.mxu0 0.0
  %550 = vmatpush1.msra.mxu0 0.0
  %551 = vmatprep.subr.mxu0 0.0
  %552 = vmatpush1.msra.mxu0 0.0
  %553 = vmatprep.subr.mxu0 0.0
  %554 = vmatpush1.msra.mxu0 0.0
  %555 = vmatprep.subr.mxu0 0.0
  %556 = vmatpush1.msra.mxu0 0.0
  %557 = vmatprep.subr.mxu0 0.0
  %558 = vmatpush1.msra.mxu0 0.0
  %559 = vmatprep.subr.mxu0 0.0
  %560 = vmatpush1.msra.mxu0 0.0
  %561 = vmatprep.subr.mxu0 0.0
  %562 = vmatpush1.msra.mxu0 0.0
  %563 = vmatprep.subr.mxu0 0.0
  %564 = vmatpush1.msra.mxu0 0.0
  %565 = vmatprep.subr.mxu0 0.0
  %566 = vmatpush1.msra.mxu0 0.0
  %567 = vmatprep.subr.mxu0 0.0
  %568 = vmatpush1.msra.mxu0 %v535
  %569 = vmatprep.subr.mxu0 0.0
  %570 = vmatpush2.msra.mxu0 0.0
  %571 = vmatprep.subr.mxu0 0.0
  %572 = vmatpush2.msra.mxu0 0.0
  %573 = vmatprep.subr.mxu0 0.0
  %574 = vmatpush2.msra.mxu0 0.0
  %575 = vmatprep.subr.mxu0 0.0
  %576 = vmatpush2.msra.mxu0 0.0
  %577 = vmatprep.subr.mxu0 0.0
  %578 = vmatpush2.msra.mxu0 0.0
  %579 = vmatprep.subr.mxu0 0.0
  %580 = vmatpush2.msra.mxu0 0.0
  %581 = vmatprep.subr.mxu0 0.0
  %582 = vmatpush2.msra.mxu0 0.0
  %583 = vmatprep.subr.mxu0 0.0
  %584 = vmatpush2.msra.mxu0 0.0
  %585 = vmatprep.subr.mxu0 0.0
  %586 = vmatpush2.msra.mxu0 0.0
  %587 = vmatprep.subr.mxu0 0.0
  %588 = vmatpush2.msra.mxu0 0.0
  %589 = vmatprep.subr.mxu0 0.0
  %590 = vmatpush2.msra.mxu0 0.0
  %591 = vmatprep.subr.mxu0 0.0
  %592 = vmatpush2.msra.mxu0 0.0
  %593 = vmatprep.subr.mxu0 0.0
  %594 = vmatpush2.msra.mxu0 0.0
  %595 = vmatprep.subr.mxu0 0.0
  %596 = vmatpush2.msra.mxu0 0.0
  %597 = vmatprep.subr.mxu0 0.0
  %598 = vmatpush2.msra.mxu0 0.0
  %599 = vmatprep.subr.mxu0 0.0
  %600 = vmatpush2.msra.mxu0 0.0
  %601 = vmatprep.mubr.f32.mxu0 0.0
  %602 = vmatmul.mubr.f32.gmra.mxu0 %v486
  %v603 = vpop.f32.mrf.mxu0
  %v604 = vadd.f32 0.0, %v603
  %v605 = vpop.f32.mrf.mxu0
  %606 = vmatprep.mubr.f32.mxu0 0.0
  %607 = vmatmul.mubr.f32.gmra.mxu0 %v489
  %v608 = vpop.f32.mrf.mxu0
  %v609 = vadd.f32 0.0, %v608
  %v610 = vpop.f32.mrf.mxu0
  %611 = vmatprep.mubr.f32.mxu0 0.0
  %612 = vmatmul.mubr.f32.gmra.mxu0 %v492
  %v613 = vpop.f32.mrf.mxu0
  %v614 = vadd.f32 0.0, %v613
  %v615 = vpop.f32.mrf.mxu0
  %616 = vmatprep.mubr.f32.mxu0 0.0
  %617 = vmatmul.mubr.f32.gmra.mxu0 %v495
  %v618 = vpop.f32.mrf.mxu0
  %v619 = vadd.f32 0.0, %v618
  %v620 = vpop.f32.mrf.mxu0
  %621 = vmatprep.mubr.f32.mxu0 0.0
  %622 = vmatmul.mubr.f32.gmra.mxu0 %v498
  %v623 = vpop.f32.mrf.mxu0
  %v624 = vadd.f32 0.0, %v623
  %v625 = vpop.f32.mrf.mxu0
  %626 = vmatprep.mubr.f32.mxu0 0.0
  %627 = vmatmul.mubr.f32.gmra.mxu0 %v501
  %v628 = vpop.f32.mrf.mxu0
  %v629 = vadd.f32 0.0, %v628
  %v630 = vpop.f32.mrf.mxu0
  %631 = vmatprep.mubr.f32.mxu0 0.0
  %632 = vmatmul.mubr.f32.gmra.mxu0 %v504
  %v633 = vpop.f32.mrf.mxu0
  %v634 = vadd.f32 0.0, %v633
  %v635 = vpop.f32.mrf.mxu0
  %636 = vmatprep.mubr.f32.mxu0 0.0
  %637 = vmatmul.mubr.f32.gmra.mxu0 %v507
  %v638 = vpop.f32.mrf.mxu0
  %v639 = vadd.f32 0.0, %v638
  %v640 = vpop.f32.mrf.mxu0
  %641 = vmatprep.mubr.f32.mxu0 0.0
  %642 = vmatmul.mubr.f32.gmra.mxu0 %v510
  %v643 = vpop.f32.mrf.mxu0
  %v644 = vadd.f32 0.0, %v643
  %v645 = vpop.f32.mrf.mxu0
  %646 = vmatprep.mubr.f32.mxu0 0.0
  %647 = vmatmul.mubr.f32.gmra.mxu0 %v513
  %v648 = vpop.f32.mrf.mxu0
  %v649 = vadd.f32 0.0, %v648
  %v650 = vpop.f32.mrf.mxu0
  %651 = vmatprep.mubr.f32.mxu0 0.0
  %652 = vmatmul.mubr.f32.gmra.mxu0 %v516
  %v653 = vpop.f32.mrf.mxu0
  %v654 = vadd.f32 0.0, %v653
  %v655 = vpop.f32.mrf.mxu0
  %656 = vmatprep.mubr.f32.mxu0 0.0
  %657 = vmatmul.mubr.f32.gmra.mxu0 %v519
  %v658 = vpop.f32.mrf.mxu0
  %v659 = vadd.f32 0.0, %v658
  %v660 = vpop.f32.mrf.mxu0
  %661 = vmatprep.mubr.f32.mxu0 0.0
  %662 = vmatmul.mubr.f32.gmra.mxu0 %v522
  %v663 = vpop.f32.mrf.mxu0
  %v664 = vadd.f32 0.0, %v663
  %v665 = vpop.f32.mrf.mxu0
  %666 = vmatprep.mubr.f32.mxu0 0.0
  %667 = vmatmul.mubr.f32.gmra.mxu0 %v525
  %v668 = vpop.f32.mrf.mxu0
  %v669 = vadd.f32 0.0, %v668
  %v670 = vpop.f32.mrf.mxu0
  %671 = vmatprep.mubr.f32.mxu0 0.0
  %672 = vmatmul.mubr.f32.gmra.mxu0 %v528
  %v673 = vpop.f32.mrf.mxu0
  %v674 = vadd.f32 0.0, %v673
  %v675 = vpop.f32.mrf.mxu0
  %676 = vmatprep.mubr.f32.mxu0 0.0
  %677 = vmatmul.mubr.f32.gmra.mxu0 %v531
  %v678 = vpop.f32.mrf.mxu0
  %v679 = vadd.f32 0.0, %v678
  %v680 = vpop.f32.mrf.mxu0
  %681 = vdwg.mxu0
  %v682 = vadd.f32 %v389, %v604
  %v683 = vadd.f32 %v394, %v609
  %v684 = vadd.f32 %v399, %v614
  %v685 = vadd.f32 %v404, %v619
  %v686 = vadd.f32 %v409, %v624
  %v687 = vadd.f32 %v414, %v629
  %v688 = vadd.f32 %v419, %v634
  %v689 = vadd.f32 %v424, %v639
  %v690 = vadd.f32 %v429, %v644
  %v691 = vadd.f32 %v434, %v649
  %v692 = vadd.f32 %v439, %v654
  %v693 = vadd.f32 %v444, %v659
  %v694 = vadd.f32 %v449, %v664
  %v695 = vadd.f32 %v454, %v669
  %v696 = vadd.f32 %v459, %v674
  %v697 = vadd.f32 %v464, %v679
  %v698 = vld [vmem:[%s6] sm:$0x1]
  %v700 = vlaneseq
  %v701 = vshrl.u32 %v700, 7
  %v702 = vsub.s32 0, %v701
  %v703 = vrot.slane %v698, %v702
  %v705 = vadd.f32 %v682, %v703
  %v706 = vadd.f32 %v683, %v703
  %v707 = vadd.f32 %v684, %v703
  %v708 = vadd.f32 %v685, %v703
  %v709 = vadd.f32 %v686, %v703
  %v710 = vadd.f32 %v687, %v703
  %v711 = vadd.f32 %v688, %v703
  %v712 = vadd.f32 %v689, %v703
  %v713 = vadd.f32 %v690, %v703
  %v714 = vadd.f32 %v691, %v703
  %v715 = vadd.f32 %v692, %v703
  %v716 = vadd.f32 %v693, %v703
  %v717 = vadd.f32 %v694, %v703
  %v718 = vadd.f32 %v695, %v703
  %v719 = vadd.f32 %v696, %v703
  %v720 = vadd.f32 %v697, %v703
  %v721 = vmax.f32 %v705, 0.0
  %v722 = vmax.f32 %v706, 0.0
  %v723 = vmax.f32 %v707, 0.0
  %v724 = vmax.f32 %v708, 0.0
  %v725 = vmax.f32 %v709, 0.0
  %v726 = vmax.f32 %v710, 0.0
  %v727 = vmax.f32 %v711, 0.0
  %v728 = vmax.f32 %v712, 0.0
  %v729 = vmax.f32 %v713, 0.0
  %v730 = vmax.f32 %v714, 0.0
  %v731 = vmax.f32 %v715, 0.0
  %v732 = vmax.f32 %v716, 0.0
  %v733 = vmax.f32 %v717, 0.0
  %v734 = vmax.f32 %v718, 0.0
  %v735 = vmax.f32 %v719, 0.0
  %v736 = vmax.f32 %v720, 0.0
  %v737 = vld [vmem:[%s7] sm:$0xff]
  %v738 = vld [vmem:[%s7 + $0x8] sm:$0xff]
  %v739 = vld [vmem:[%s7 + $0x10] sm:$0xff]
  %v740 = vld [vmem:[%s7 + $0x18] sm:$0xff]
  %v741 = vld [vmem:[%s8] sm:$0x1]
  %v743 = vlaneseq
  %v744 = vshrl.u32 %v743, 7
  %v745 = vsub.s32 0, %v744
  %v746 = vrot.slane %v741, %v745
  %vm748 = vcmask 261120
  %v750 = vsel %vm748, %v721, 0
  %v753 = vsel %vm748, %v722, 0
  %v756 = vsel %vm748, %v723, 0
  %v759 = vsel %vm748, %v724, 0
  %v762 = vsel %vm748, %v725, 0
  %v765 = vsel %vm748, %v726, 0
  %v768 = vsel %vm748, %v727, 0
  %v771 = vsel %vm748, %v728, 0
  %v774 = vsel %vm748, %v729, 0
  %v777 = vsel %vm748, %v730, 0
  %v780 = vsel %vm748, %v731, 0
  %v783 = vsel %vm748, %v732, 0
  %v786 = vsel %vm748, %v733, 0
  %v789 = vsel %vm748, %v734, 0
  %v792 = vsel %vm748, %v735, 0
  %v795 = vsel %vm748, %v736, 0
  %797 = vmatprep.subr.mxu0 0.0
  %798 = vmatpush1.msra.mxu0 0.0
  %799 = vmatprep.subr.mxu0 0.0
  %800 = vmatpush1.msra.mxu0 0.0
  %801 = vmatprep.subr.mxu0 0.0
  %802 = vmatpush1.msra.mxu0 0.0
  %803 = vmatprep.subr.mxu0 0.0
  %804 = vmatpush1.msra.mxu0 0.0
  %805 = vmatprep.subr.mxu0 0.0
  %806 = vmatpush1.msra.mxu0 0.0
  %807 = vmatprep.subr.mxu0 0.0
  %808 = vmatpush1.msra.mxu0 0.0
  %809 = vmatprep.subr.mxu0 0.0
  %810 = vmatpush1.msra.mxu0 0.0
  %811 = vmatprep.subr.mxu0 0.0
  %812 = vmatpush1.msra.mxu0 0.0
  %813 = vmatprep.subr.mxu0 0.0
  %814 = vmatpush1.msra.mxu0 0.0
  %815 = vmatprep.subr.mxu0 0.0
  %816 = vmatpush1.msra.mxu0 0.0
  %817 = vmatprep.subr.mxu0 0.0
  %818 = vmatpush1.msra.mxu0 0.0
  %819 = vmatprep.subr.mxu0 0.0
  %820 = vmatpush1.msra.mxu0 0.0
  %821 = vmatprep.subr.mxu0 0.0
  %822 = vmatpush1.msra.mxu0 %v740
  %823 = vmatprep.subr.mxu0 0.0
  %824 = vmatpush1.msra.mxu0 %v739
  %825 = vmatprep.subr.mxu0 0.0
  %826 = vmatpush1.msra.mxu0 %v738
  %827 = vmatprep.subr.mxu0 0.0
  %828 = vmatpush1.msra.mxu0 %v737
  %829 = vmatprep.subr.mxu0 0.0
  %830 = vmatpush2.msra.mxu0 0.0
  %831 = vmatprep.subr.mxu0 0.0
  %832 = vmatpush2.msra.mxu0 0.0
  %833 = vmatprep.subr.mxu0 0.0
  %834 = vmatpush2.msra.mxu0 0.0
  %835 = vmatprep.subr.mxu0 0.0
  %836 = vmatpush2.msra.mxu0 0.0
  %837 = vmatprep.subr.mxu0 0.0
  %838 = vmatpush2.msra.mxu0 0.0
  %839 = vmatprep.subr.mxu0 0.0
  %840 = vmatpush2.msra.mxu0 0.0
  %841 = vmatprep.subr.mxu0 0.0
  %842 = vmatpush2.msra.mxu0 0.0
  %843 = vmatprep.subr.mxu0 0.0
  %844 = vmatpush2.msra.mxu0 0.0
  %845 = vmatprep.subr.mxu0 0.0
  %846 = vmatpush2.msra.mxu0 0.0
  %847 = vmatprep.subr.mxu0 0.0
  %848 = vmatpush2.msra.mxu0 0.0
  %849 = vmatprep.subr.mxu0 0.0
  %850 = vmatpush2.msra.mxu0 0.0
  %851 = vmatprep.subr.mxu0 0.0
  %852 = vmatpush2.msra.mxu0 0.0
  %853 = vmatprep.subr.mxu0 0.0
  %854 = vmatpush2.msra.mxu0 0.0
  %855 = vmatprep.subr.mxu0 0.0
  %856 = vmatpush2.msra.mxu0 0.0
  %857 = vmatprep.subr.mxu0 0.0
  %858 = vmatpush2.msra.mxu0 0.0
  %859 = vmatprep.subr.mxu0 0.0
  %860 = vmatpush2.msra.mxu0 0.0
  %861 = vmatprep.mubr.f32.mxu0 0.0
  %862 = vmatmul.mubr.f32.gmra.mxu0 %v750
  %v863 = vpop.f32.mrf.mxu0
  %v864 = vadd.f32 %v746, %v863
  %v865 = vpop.f32.mrf.mxu0
  %866 = vmatprep.mubr.f32.mxu0 0.0
  %867 = vmatmul.mubr.f32.gmra.mxu0 %v753
  %v868 = vpop.f32.mrf.mxu0
  %v869 = vadd.f32 %v746, %v868
  %v870 = vpop.f32.mrf.mxu0
  %871 = vmatprep.mubr.f32.mxu0 0.0
  %872 = vmatmul.mubr.f32.gmra.mxu0 %v756
  %v873 = vpop.f32.mrf.mxu0
  %v874 = vadd.f32 %v746, %v873
  %v875 = vpop.f32.mrf.mxu0
  %876 = vmatprep.mubr.f32.mxu0 0.0
  %877 = vmatmul.mubr.f32.gmra.mxu0 %v759
  %v878 = vpop.f32.mrf.mxu0
  %v879 = vadd.f32 %v746, %v878
  %v880 = vpop.f32.mrf.mxu0
  %881 = vmatprep.mubr.f32.mxu0 0.0
  %882 = vmatmul.mubr.f32.gmra.mxu0 %v762
  %v883 = vpop.f32.mrf.mxu0
  %v884 = vadd.f32 %v746, %v883
  %v885 = vpop.f32.mrf.mxu0
  %886 = vmatprep.mubr.f32.mxu0 0.0
  %887 = vmatmul.mubr.f32.gmra.mxu0 %v765
  %v888 = vpop.f32.mrf.mxu0
  %v889 = vadd.f32 %v746, %v888
  %v890 = vpop.f32.mrf.mxu0
  %891 = vmatprep.mubr.f32.mxu0 0.0
  %892 = vmatmul.mubr.f32.gmra.mxu0 %v768
  %v893 = vpop.f32.mrf.mxu0
  %v894 = vadd.f32 %v746, %v893
  %v895 = vpop.f32.mrf.mxu0
  %896 = vmatprep.mubr.f32.mxu0 0.0
  %897 = vmatmul.mubr.f32.gmra.mxu0 %v771
  %v898 = vpop.f32.mrf.mxu0
  %v899 = vadd.f32 %v746, %v898
  %v900 = vpop.f32.mrf.mxu0
  %901 = vmatprep.mubr.f32.mxu0 0.0
  %902 = vmatmul.mubr.f32.gmra.mxu0 %v774
  %v903 = vpop.f32.mrf.mxu0
  %v904 = vadd.f32 %v746, %v903
  %v905 = vpop.f32.mrf.mxu0
  %906 = vmatprep.mubr.f32.mxu0 0.0
  %907 = vmatmul.mubr.f32.gmra.mxu0 %v777
  %v908 = vpop.f32.mrf.mxu0
  %v909 = vadd.f32 %v746, %v908
  %v910 = vpop.f32.mrf.mxu0
  %911 = vmatprep.mubr.f32.mxu0 0.0
  %912 = vmatmul.mubr.f32.gmra.mxu0 %v780
  %v913 = vpop.f32.mrf.mxu0
  %v914 = vadd.f32 %v746, %v913
  %v915 = vpop.f32.mrf.mxu0
  %916 = vmatprep.mubr.f32.mxu0 0.0
  %917 = vmatmul.mubr.f32.gmra.mxu0 %v783
  %v918 = vpop.f32.mrf.mxu0
  %v919 = vadd.f32 %v746, %v918
  %v920 = vpop.f32.mrf.mxu0
  %921 = vmatprep.mubr.f32.mxu0 0.0
  %922 = vmatmul.mubr.f32.gmra.mxu0 %v786
  %v923 = vpop.f32.mrf.mxu0
  %v924 = vadd.f32 %v746, %v923
  %v925 = vpop.f32.mrf.mxu0
  %926 = vmatprep.mubr.f32.mxu0 0.0
  %927 = vmatmul.mubr.f32.gmra.mxu0 %v789
  %v928 = vpop.f32.mrf.mxu0
  %v929 = vadd.f32 %v746, %v928
  %v930 = vpop.f32.mrf.mxu0
  %931 = vmatprep.mubr.f32.mxu0 0.0
  %932 = vmatmul.mubr.f32.gmra.mxu0 %v792
  %v933 = vpop.f32.mrf.mxu0
  %v934 = vadd.f32 %v746, %v933
  %v935 = vpop.f32.mrf.mxu0
  %936 = vmatprep.mubr.f32.mxu0 0.0
  %937 = vmatmul.mubr.f32.gmra.mxu0 %v795
  %v938 = vpop.f32.mrf.mxu0
  %v939 = vadd.f32 %v746, %v938
  %v940 = vpop.f32.mrf.mxu0
  %941 = vdwg.mxu0
  %v942 = vmax.f32 %v864, 0.0
  %v943 = vmax.f32 %v869, 0.0
  %v944 = vmax.f32 %v874, 0.0
  %v945 = vmax.f32 %v879, 0.0
  %v946 = vmax.f32 %v884, 0.0
  %v947 = vmax.f32 %v889, 0.0
  %v948 = vmax.f32 %v894, 0.0
  %v949 = vmax.f32 %v899, 0.0
  %v950 = vmax.f32 %v904, 0.0
  %v951 = vmax.f32 %v909, 0.0
  %v952 = vmax.f32 %v914, 0.0
  %v953 = vmax.f32 %v919, 0.0
  %v954 = vmax.f32 %v924, 0.0
  %v955 = vmax.f32 %v929, 0.0
  %v956 = vmax.f32 %v934, 0.0
  %v957 = vmax.f32 %v939, 0.0
  %v958 = vld [vmem:[%s9] sm:$0x1]
  %v960 = vlaneseq
  %v961 = vshrl.u32 %v960, 7
  %v962 = vsub.s32 0, %v961
  %v963 = vrot.slane %v958, %v962
  %v965 = vmul.f32 %v942, %v963
  %v966 = vmul.f32 %v943, %v963
  %v967 = vmul.f32 %v944, %v963
  %v968 = vmul.f32 %v945, %v963
  %v969 = vmul.f32 %v946, %v963
  %v970 = vmul.f32 %v947, %v963
  %v971 = vmul.f32 %v948, %v963
  %v972 = vmul.f32 %v949, %v963
  %v973 = vmul.f32 %v950, %v963
  %v974 = vmul.f32 %v951, %v963
  %v975 = vmul.f32 %v952, %v963
  %v976 = vmul.f32 %v953, %v963
  %v977 = vmul.f32 %v954, %v963
  %v978 = vmul.f32 %v955, %v963
  %v979 = vmul.f32 %v956, %v963
  %v980 = vmul.f32 %v957, %v963
  %v981 = vsel %vm748, %v965, 0.0
  %982 = vadd.xlane.f32.xlu0 %v981
  %v983 = vpop.xlane.xlu0 %982
  %v984 = vsel %vm748, %v966, 0.0
  %985 = vadd.xlane.f32.xlu0 %v984
  %v986 = vpop.xlane.xlu0 %985
  %v987 = vsel %vm748, %v967, 0.0
  %988 = vadd.xlane.f32.xlu0 %v987
  %v989 = vpop.xlane.xlu0 %988
  %v990 = vsel %vm748, %v968, 0.0
  %991 = vadd.xlane.f32.xlu0 %v990
  %v992 = vpop.xlane.xlu0 %991
  %v993 = vsel %vm748, %v969, 0.0
  %994 = vadd.xlane.f32.xlu0 %v993
  %v995 = vpop.xlane.xlu0 %994
  %v996 = vsel %vm748, %v970, 0.0
  %997 = vadd.xlane.f32.xlu0 %v996
  %v998 = vpop.xlane.xlu0 %997
  %v999 = vsel %vm748, %v971, 0.0
  %1000 = vadd.xlane.f32.xlu0 %v999
  %v1001 = vpop.xlane.xlu0 %1000
  %v1002 = vsel %vm748, %v972, 0.0
  %1003 = vadd.xlane.f32.xlu0 %v1002
  %v1004 = vpop.xlane.xlu0 %1003
  %v1005 = vsel %vm748, %v973, 0.0
  %1006 = vadd.xlane.f32.xlu0 %v1005
  %v1007 = vpop.xlane.xlu0 %1006
  %v1008 = vsel %vm748, %v974, 0.0
  %1009 = vadd.xlane.f32.xlu0 %v1008
  %v1010 = vpop.xlane.xlu0 %1009
  %v1011 = vsel %vm748, %v975, 0.0
  %1012 = vadd.xlane.f32.xlu0 %v1011
  %v1013 = vpop.xlane.xlu0 %1012
  %v1014 = vsel %vm748, %v976, 0.0
  %1015 = vadd.xlane.f32.xlu0 %v1014
  %v1016 = vpop.xlane.xlu0 %1015
  %v1017 = vsel %vm748, %v977, 0.0
  %1018 = vadd.xlane.f32.xlu0 %v1017
  %v1019 = vpop.xlane.xlu0 %1018
  %v1020 = vsel %vm748, %v978, 0.0
  %1021 = vadd.xlane.f32.xlu0 %v1020
  %v1022 = vpop.xlane.xlu0 %1021
  %v1023 = vsel %vm748, %v979, 0.0
  %1024 = vadd.xlane.f32.xlu0 %v1023
  %v1025 = vpop.xlane.xlu0 %1024
  %v1026 = vsel %vm748, %v980, 0.0
  %1027 = vadd.xlane.f32.xlu0 %v1026
  %v1028 = vpop.xlane.xlu0 %1027
  %v1029 = vld [vmem:[#allocation2] sm:$0x1]
  %v1031 = vlaneseq
  %v1032 = vshrl.u32 %v1031, 7
  %v1033 = vsub.s32 0, %v1032
  %v1034 = vrot.slane %v1029, %v1033
  %v1036 = vadd.f32 %v983, %v1034
  %v1037 = vadd.f32 %v986, %v1034
  %v1038 = vadd.f32 %v989, %v1034
  %v1039 = vadd.f32 %v992, %v1034
  %v1040 = vadd.f32 %v995, %v1034
  %v1041 = vadd.f32 %v998, %v1034
  %v1042 = vadd.f32 %v1001, %v1034
  %v1043 = vadd.f32 %v1004, %v1034
  %v1044 = vadd.f32 %v1007, %v1034
  %v1045 = vadd.f32 %v1010, %v1034
  %v1046 = vadd.f32 %v1013, %v1034
  %v1047 = vadd.f32 %v1016, %v1034
  %v1048 = vadd.f32 %v1019, %v1034
  %v1049 = vadd.f32 %v1022, %v1034
  %v1050 = vadd.f32 %v1025, %v1034
  %v1051 = vadd.f32 %v1028, %v1034
  %vm1052 = vcmask 7168
  %1053 = vst.msk [vmem:[%s11] sm:$0xff] %vm1052, %v1036
  %1054 = vst.msk [vmem:[%s11 + $0x8] sm:$0xff] %vm1052, %v1037
  %1055 = vst.msk [vmem:[%s11 + $0x10] sm:$0xff] %vm1052, %v1038
  %1056 = vst.msk [vmem:[%s11 + $0x18] sm:$0xff] %vm1052, %v1039
  %1057 = vst.msk [vmem:[%s11 + $0x20] sm:$0xff] %vm1052, %v1040
  %1058 = vst.msk [vmem:[%s11 + $0x28] sm:$0xff] %vm1052, %v1041
  %1059 = vst.msk [vmem:[%s11 + $0x30] sm:$0xff] %vm1052, %v1042
  %1060 = vst.msk [vmem:[%s11 + $0x38] sm:$0xff] %vm1052, %v1043
  %1061 = vst.msk [vmem:[%s11 + $0x40] sm:$0xff] %vm1052, %v1044
  %1062 = vst.msk [vmem:[%s11 + $0x48] sm:$0xff] %vm1052, %v1045
  %1063 = vst.msk [vmem:[%s11 + $0x50] sm:$0xff] %vm1052, %v1046
  %1064 = vst.msk [vmem:[%s11 + $0x58] sm:$0xff] %vm1052, %v1047
  %1065 = vst.msk [vmem:[%s11 + $0x60] sm:$0xff] %vm1052, %v1048
  %1066 = vst.msk [vmem:[%s11 + $0x68] sm:$0xff] %vm1052, %v1049
  %1067 = vst.msk [vmem:[%s11 + $0x70] sm:$0xff] %vm1052, %v1050
  %1068 = vst.msk [vmem:[%s11 + $0x78] sm:$0xff] %vm1052, %v1051
  // Predicated region
  $region46: #{critic_forward.1} parent=0 // pred_check
    _
  $region47: #{critic_forward.1} parent=0 // pred_check_branch
    %1070 = sbr.rel (0) target = $region49
  $region48: #{critic_forward.1} parent=0 // pred_region
    _
  $region49: #{critic_forward.1} parent=0 // pred_fallthru
    _
  // Predicated region
  $region50: #{critic_forward.1} parent=0 // pred_check
    _
  $region51: #{critic_forward.1} parent=0 // pred_check_branch
    %1072 = sbr.rel (0) target = $region53
  $region52: #{critic_forward.1} parent=0 // pred_region
    _
  $region53: #{critic_forward.1} parent=0 // pred_fallthru
    _

</llo_original>
